<compile_context>
chip_gen: v7x
topology: tpu7x:2x2x1
jax: 0.10.0
libtpu: 0.0.40
codegen_flags: <defaults>
</compile_context>

<pallas_src>
from functools import partial

import jax
import jax.numpy as jnp
from jax.experimental import pallas as pl
from jax.experimental.pallas import tpu as pltpu

_EPS = 1e-5


def _layernorm(v, w, b):
    # PyTorch LayerNorm: population variance, eps inside rsqrt.
    mu = jnp.mean(v, axis=-1, keepdims=True)
    var = jnp.mean((v - mu) ** 2, axis=-1, keepdims=True)
    return (v - mu) * jax.lax.rsqrt(var + _EPS) * w + b


# --------------------------------------------------------------------------
# Stage 1: LN1 + fused QKV projection.  x tile (1, TN, C) -> q (1, TN, C),
# kv (1, TN, 2C), both bf16 (MXU inputs for stage 2).  Attention scale is
# already folded into the q columns of qkv_w.
# --------------------------------------------------------------------------
def qkv_kernel(x_ref, ln1_w_ref, ln1_b_ref, qkv_w_ref, q_ref, kv_ref):
    x = x_ref[0].astype(jnp.float32)                            # (TN, C), f32 stats
    h = _layernorm(x, ln1_w_ref[0], ln1_b_ref[0])
    qkv = jnp.dot(h.astype(jnp.bfloat16), qkv_w_ref[...],       # bf16 x bf16 -> f32 acc
                  preferred_element_type=jnp.float32)           # (TN, 3C)
    C = q_ref.shape[-1]
    q_ref[0] = qkv[:, :C].astype(q_ref.dtype)
    kv_ref[0] = qkv[:, C:].astype(kv_ref.dtype)


# --------------------------------------------------------------------------
# Stage 2: attention (q tile vs full-sequence K/V) + proj + residual +
# LN2 + MLP + residual.
# --------------------------------------------------------------------------
def attn_mlp_kernel(x_ref, q_ref, kv_ref,
                    proj_w_ref, proj_b_ref,
                    ln2_w_ref, ln2_b_ref,
                    fc1_w_ref, fc1_b_ref,
                    fc2_w_ref, fc2_b_ref,
                    out_ref, *, num_heads, head_dim):
    C = num_heads * head_dim
    x = x_ref[0].astype(jnp.float32)        # (TQ, C) residual carrier, f32
    q = q_ref[0]                            # (TQ, C) bf16, scale pre-folded
    kv = kv_ref[0]                          # (N, 2C) bf16: [k | v]

    # Per-head attention; accumulate the proj matmul per head so no lane-dim
    # concatenate is ever materialized.  proj bias + residual folded into init.
    acc = x + proj_b_ref[0]                                     # (TQ, C) f32
    for h in range(num_heads):              # static unroll (small num_heads)
        lo, hi = h * head_dim, (h + 1) * head_dim
        qh = q[:, lo:hi]                                        # (TQ, hd) bf16
        kh = kv[:, lo:hi]                                       # (N, hd)  bf16
        vh = kv[:, C + lo:C + hi]                               # (N, hd)  bf16
        # q @ k^T without materializing a transpose of K.
        logits = jax.lax.dot_general(
            qh, kh, (((1,), (1,)), ((), ())),
            preferred_element_type=jnp.float32)                 # (TQ, N)
        logits = logits - jnp.max(logits, axis=-1, keepdims=True)
        p = jnp.exp(logits)                                     # f32 softmax
        p = p * pl.reciprocal(jnp.sum(p, axis=-1, keepdims=True), approx=True)
        pv = jnp.dot(p.astype(jnp.bfloat16), vh,
                     preferred_element_type=jnp.float32)        # (TQ, hd)
        acc += jnp.dot(pv.astype(jnp.bfloat16), proj_w_ref[lo:hi, :],
                       preferred_element_type=jnp.float32)      # (TQ, C)

    # MLP branch on the post-attention residual stream.
    h2 = _layernorm(acc, ln2_w_ref[0], ln2_b_ref[0])
    z = jnp.dot(h2.astype(jnp.bfloat16), fc1_w_ref[...],
                preferred_element_type=jnp.float32) + fc1_b_ref[0]
    z = jax.nn.gelu(z, approximate=False)   # exact erf GELU == nn.GELU default (f32)
    z = jnp.dot(z.astype(jnp.bfloat16), fc2_w_ref[...],
                preferred_element_type=jnp.float32) + fc2_b_ref[0]

    out_ref[0] = (acc + z).astype(out_ref.dtype)                # residual 2


# --------------------------------------------------------------------------
# Wrapper
# --------------------------------------------------------------------------
def _pick_seq_tile(N, target=256):
    if N <= target:
        return N
    for t in range(target, 7, -1):
        if N % t == 0 and t % 8 == 0:
            return t
    return N


def block_forward(x, kparams, num_heads, seq_tile=None):
    B, N, C = x.shape
    head_dim = C // num_heads
    H = kparams["fc1_w"].shape[1]
    TN = seq_tile if seq_tile is not None else _pick_seq_tile(N)
    assert N % TN == 0 and (TN % 8 == 0 or TN == N), "bad sequence tile"
    n_tiles = N // TN

    cparams = pltpu.CompilerParams(
        dimension_semantics=("parallel", "parallel"),
        vmem_limit_bytes=48 * 1024 * 1024,   # above the 16/32 MiB scoped defaults
    )

    def wspec(shape):
        # Replicated weights: constant block index across the whole grid.
        return pl.BlockSpec(shape, lambda b, n: (0,) * len(shape))

    # ---- Stage 1: LN1 + QKV projection ----
    q, kv = pl.pallas_call(
        qkv_kernel,
        out_shape=(jax.ShapeDtypeStruct((B, N, C), jnp.bfloat16),
                   jax.ShapeDtypeStruct((B, N, 2 * C), jnp.bfloat16)),
        grid_spec=pltpu.PrefetchScalarGridSpec(
            num_scalar_prefetch=0,
            grid=(B, n_tiles),
            in_specs=[
                pl.BlockSpec((1, TN, C), lambda b, n: (b, n, 0)),
                wspec((1, C)), wspec((1, C)),        # ln1 weight / bias (f32)
                wspec((C, 3 * C)),                   # qkv weight (bf16, scale folded)
            ],
            out_specs=[
                pl.BlockSpec((1, TN, C), lambda b, n: (b, n, 0)),
                pl.BlockSpec((1, TN, 2 * C), lambda b, n: (b, n, 0)),
            ],
        ),
        compiler_params=cparams,
    )(x, kparams["ln1_w"], kparams["ln1_b"], kparams["qkv_w"])

    # ---- Stage 2: attention + proj + residual + LN2 + MLP + residual ----
    kernel2 = partial(attn_mlp_kernel, num_heads=num_heads, head_dim=head_dim)
    out = pl.pallas_call(
        kernel2,
        out_shape=jax.ShapeDtypeStruct((B, N, C), x.dtype),
        grid_spec=pltpu.PrefetchScalarGridSpec(
            num_scalar_prefetch=0,
            grid=(B, n_tiles),
            in_specs=[
                pl.BlockSpec((1, TN, C), lambda b, n: (b, n, 0)),     # x tile
                pl.BlockSpec((1, TN, C), lambda b, n: (b, n, 0)),     # q tile
                pl.BlockSpec((1, N, 2 * C), lambda b, n: (b, 0, 0)),  # full-seq K/V
                wspec((C, C)), wspec((1, C)),                         # proj w / b
                wspec((1, C)), wspec((1, C)),                         # ln2 w / b
                wspec((C, H)), wspec((1, H)),                         # fc1 w / b
                wspec((H, C)), wspec((1, C)),                         # fc2 w / b
            ],
            out_specs=pl.BlockSpec((1, TN, C), lambda b, n: (b, n, 0)),
        ),
        compiler_params=cparams,
    )(x, q, kv,
      kparams["proj_w"], kparams["proj_b"],
      kparams["ln2_w"], kparams["ln2_b"],
      kparams["fc1_w"], kparams["fc1_b"],
      kparams["fc2_w"], kparams["fc2_b"])
    return out


# --------------------------------------------------------------------------
# Parameters
# --------------------------------------------------------------------------
def init_params(key, dim, mlp_ratio=4.0):
    """Master (f32, PyTorch-equivalent) parameters. Linear weights stored (in, out)."""
    H = int(dim * mlp_ratio)
    ks = jax.random.split(key, 4)
    std = 0.02
    return {
        "ln1_w": jnp.ones((1, dim), jnp.float32),
        "ln1_b": jnp.zeros((1, dim), jnp.float32),
        "qkv_w": (std * jax.random.normal(ks[0], (dim, 3 * dim))).astype(jnp.float32),
        "proj_w": (std * jax.random.normal(ks[1], (dim, dim))).astype(jnp.float32),
        "proj_b": jnp.zeros((1, dim), jnp.float32),
        "ln2_w": jnp.ones((1, dim), jnp.float32),
        "ln2_b": jnp.zeros((1, dim), jnp.float32),
        "fc1_w": (std * jax.random.normal(ks[2], (dim, H))).astype(jnp.float32),
        "fc1_b": jnp.zeros((1, H), jnp.float32),
        "fc2_w": (std * jax.random.normal(ks[3], (H, dim))).astype(jnp.float32),
        "fc2_b": jnp.zeros((1, dim), jnp.float32),
    }


def prepare_params(params, num_heads):
    """One-time transform: fold attention scale into the q columns of qkv_w and
    cast all matmul weights to bf16 (MXU inputs). LN params + biases stay f32."""
    C = params["ln1_w"].shape[-1]
    head_dim = C // num_heads
    scale = head_dim ** -0.5
    qkv_w = params["qkv_w"].at[:, :C].multiply(scale)
    return {
        "ln1_w": params["ln1_w"], "ln1_b": params["ln1_b"],
        "qkv_w": qkv_w.astype(jnp.bfloat16),
        "proj_w": params["proj_w"].astype(jnp.bfloat16),
        "proj_b": params["proj_b"],
        "ln2_w": params["ln2_w"], "ln2_b": params["ln2_b"],
        "fc1_w": params["fc1_w"].astype(jnp.bfloat16),
        "fc1_b": params["fc1_b"],
        "fc2_w": params["fc2_w"].astype(jnp.bfloat16),
        "fc2_b": params["fc2_b"],
    }


# --------------------------------------------------------------------------
# Pure-JAX f32 reference (mirrors the PyTorch Block forward)
# --------------------------------------------------------------------------
def block_reference(x, params, num_heads):
    B, N, C = x.shape
    hd = C // num_heads
    scale = hd ** -0.5

    def ln(v, w, b):
        mu = v.mean(-1, keepdims=True)
        var = ((v - mu) ** 2).mean(-1, keepdims=True)
        return (v - mu) / jnp.sqrt(var + _EPS) * w + b

    h1 = ln(x, params["ln1_w"][0], params["ln1_b"][0])
    qkv = h1 @ params["qkv_w"]
    q, k, v = qkv[..., :C], qkv[..., C:2 * C], qkv[..., 2 * C:]
    q = q.reshape(B, N, num_heads, hd).transpose(0, 2, 1, 3) * scale
    k = k.reshape(B, N, num_heads, hd).transpose(0, 2, 1, 3)
    v = v.reshape(B, N, num_heads, hd).transpose(0, 2, 1, 3)
    attn = jax.nn.softmax(q @ k.transpose(0, 1, 3, 2), axis=-1)
    o = (attn @ v).transpose(0, 2, 1, 3).reshape(B, N, C)
    o = o @ params["proj_w"] + params["proj_b"][0]
    x = x + o
    h2 = ln(x, params["ln2_w"][0], params["ln2_b"][0])
    z = jax.nn.gelu(h2 @ params["fc1_w"] + params["fc1_b"][0], approximate=False)
    z = z @ params["fc2_w"] + params["fc2_b"][0]
    return x + z


if __name__ == "__main__":
    B, N, C = 2, 16, 32      # batch, tokens, embed dim (toy shapes)
    num_heads = 4            # head_dim = 8
    key = jax.random.PRNGKey(0)
    kx, kp = jax.random.split(key)
    x = jax.random.normal(kx, (B, N, C), dtype=jnp.float32)

    params = init_params(kp, C, mlp_ratio=4.0)
    kparams = prepare_params(params, num_heads)

    # seq_tile=8 -> grid (B=2, n_tiles=2): exercises the sequence tiling path.
    out = block_forward(x, kparams, num_heads, seq_tile=8)
    out = jax.block_until_ready(out)
    assert out.shape == (B, N, C)
    assert bool(jnp.all(jnp.isfinite(out)))

    ref = block_reference(x, params, num_heads)
    max_err = float(jnp.max(jnp.abs(out - ref)))
    assert bool(jnp.allclose(out, ref, atol=3e-2, rtol=3e-2)), f"max_err={max_err}"

    print("KERNEL_OK")
</pallas_src>

<mosaic_0001>
module attributes {stable_mosaic.version = 11 : i64} {
  func.func @qkv_kernel(%arg0: i32, %arg1: i32, %arg2: memref<1x8x32xf32, #tpu.memory_space<vmem>>, %arg3: memref<1x32xf32, #tpu.memory_space<vmem>>, %arg4: memref<1x32xf32, #tpu.memory_space<vmem>>, %arg5: memref<32x96xbf16, #tpu.memory_space<vmem>>, %arg6: memref<1x8x32xbf16, #tpu.memory_space<vmem>>, %arg7: memref<1x8x64xbf16, #tpu.memory_space<vmem>>) attributes {dimension_semantics = [#tpu.dimension_semantics<parallel>, #tpu.dimension_semantics<parallel>], iteration_bounds = array<i64: 2, 2>, scalar_prefetch = 0 : i64, scratch_operands = 0 : i64, tpu.core_type = #tpu.core_type<tc>, window_params = [{transform_indices = @transform_0, window_bounds = array<i64: 1, 8, 32>}, {pipeline_mode = #tpu.pipeline_mode<synchronous>, transform_indices = @transform_1, window_bounds = array<i64: 1, 32>}, {pipeline_mode = #tpu.pipeline_mode<synchronous>, transform_indices = @transform_2, window_bounds = array<i64: 1, 32>}, {pipeline_mode = #tpu.pipeline_mode<synchronous>, transform_indices = @transform_3, window_bounds = array<i64: 32, 96>}, {transform_indices = @transform_4, window_bounds = array<i64: 1, 8, 32>}, {transform_indices = @transform_5, window_bounds = array<i64: 1, 8, 64>}]} {
    %c0 = arith.constant 0 : index
    %c0_0 = arith.constant 0 : index
    %c0_1 = arith.constant 0 : index
    %0 = vector.load %arg2[%c0, %c0_0, %c0_1] : memref<1x8x32xf32, #tpu.memory_space<vmem>>, vector<1x8x32xf32>
    %1 = vector.shape_cast %0 : vector<1x8x32xf32> to vector<8x32xf32>
    %c0_2 = arith.constant 0 : index
    %c0_3 = arith.constant 0 : index
    %2 = vector.load %arg3[%c0_2, %c0_3] : memref<1x32xf32, #tpu.memory_space<vmem>>, vector<1x32xf32>
    %3 = vector.shape_cast %2 : vector<1x32xf32> to vector<32xf32>
    %c0_4 = arith.constant 0 : index
    %c0_5 = arith.constant 0 : index
    %4 = vector.load %arg4[%c0_4, %c0_5] : memref<1x32xf32, #tpu.memory_space<vmem>>, vector<1x32xf32>
    %5 = vector.shape_cast %4 : vector<1x32xf32> to vector<32xf32>
    %cst = arith.constant dense<0.000000e+00> : vector<8xf32>
    %6 = vector.multi_reduction <add>, %1, %cst [1] : vector<8x32xf32> to vector<8xf32>
    %7 = vector.shape_cast %6 : vector<8xf32> to vector<8x1xf32>
    %cst_6 = arith.constant 3.200000e+01 : f32
    %8 = vector.broadcast %cst_6 : f32 to vector<8x1xf32>
    %9 = arith.divf %7, %8 : vector<8x1xf32>
    %10 = vector.broadcast %9 : vector<8x1xf32> to vector<8x32xf32>
    %11 = arith.subf %1, %10 : vector<8x32xf32>
    %12 = arith.mulf %11, %11 : vector<8x32xf32>
    %cst_7 = arith.constant dense<0.000000e+00> : vector<8xf32>
    %13 = vector.multi_reduction <add>, %12, %cst_7 [1] : vector<8x32xf32> to vector<8xf32>
    %14 = vector.shape_cast %13 : vector<8xf32> to vector<8x1xf32>
    %cst_8 = arith.constant 3.200000e+01 : f32
    %15 = vector.broadcast %cst_8 : f32 to vector<8x1xf32>
    %16 = arith.divf %14, %15 : vector<8x1xf32>
    %17 = vector.broadcast %9 : vector<8x1xf32> to vector<8x32xf32>
    %18 = arith.subf %1, %17 : vector<8x32xf32>
    %cst_9 = arith.constant 9.99999974E-6 : f32
    %19 = vector.broadcast %cst_9 : f32 to vector<8x1xf32>
    %20 = arith.addf %16, %19 : vector<8x1xf32>
    %21 = math.rsqrt %20 : vector<8x1xf32>
    %22 = vector.broadcast %21 : vector<8x1xf32> to vector<8x32xf32>
    %23 = arith.mulf %18, %22 : vector<8x32xf32>
    %24 = vector.shape_cast %3 : vector<32xf32> to vector<1x32xf32>
    %25 = vector.broadcast %24 : vector<1x32xf32> to vector<8x32xf32>
    %26 = arith.mulf %23, %25 : vector<8x32xf32>
    %27 = vector.shape_cast %5 : vector<32xf32> to vector<1x32xf32>
    %28 = vector.broadcast %27 : vector<1x32xf32> to vector<8x32xf32>
    %29 = arith.addf %26, %28 : vector<8x32xf32>
    %30 = arith.truncf %29 : vector<8x32xf32> to vector<8x32xbf16>
    %c0_10 = arith.constant 0 : index
    %c0_11 = arith.constant 0 : index
    %31 = vector.load %arg5[%c0_10, %c0_11] : memref<32x96xbf16, #tpu.memory_space<vmem>>, vector<32x96xbf16>
    %cst_12 = arith.constant dense<0.000000e+00> : vector<8x96xf32>
    %32 = tpu.matmul %30, %31, %cst_12 {dimension_numbers = #tpu.dot_dimension_numbers<[1], [0], [0], [1], [0, 0, 1, 1], [], []>} : vector<8x32xbf16>, vector<32x96xbf16>, vector<8x96xf32> -> vector<8x96xf32>
    %33 = vector.extract_strided_slice %32 {offsets = [0, 0], sizes = [8, 32], strides = [1, 1]} : vector<8x96xf32> to vector<8x32xf32>
    %34 = arith.truncf %33 : vector<8x32xf32> to vector<8x32xbf16>
    %c0_13 = arith.constant 0 : index
    %c0_14 = arith.constant 0 : index
    %c0_15 = arith.constant 0 : index
    %35 = vector.load %arg6[%c0_13, %c0_14, %c0_15] : memref<1x8x32xbf16, #tpu.memory_space<vmem>>, vector<1x8x32xbf16>
    %36 = vector.shape_cast %35 : vector<1x8x32xbf16> to vector<8x32xbf16>
    %37 = vector.shape_cast %34 : vector<8x32xbf16> to vector<1x8x32xbf16>
    tpu.vector_store %arg6[%c0_13, %c0_14, %c0_15], %37 {strides = array<i32>} : memref<1x8x32xbf16, #tpu.memory_space<vmem>>, vector<1x8x32xbf16>,
    %38 = vector.extract_strided_slice %32 {offsets = [0, 32], sizes = [8, 64], strides = [1, 1]} : vector<8x96xf32> to vector<8x64xf32>
    %39 = arith.truncf %38 : vector<8x64xf32> to vector<8x64xbf16>
    %c0_16 = arith.constant 0 : index
    %c0_17 = arith.constant 0 : index
    %c0_18 = arith.constant 0 : index
    %40 = vector.load %arg7[%c0_16, %c0_17, %c0_18] : memref<1x8x64xbf16, #tpu.memory_space<vmem>>, vector<1x8x64xbf16>
    %41 = vector.shape_cast %40 : vector<1x8x64xbf16> to vector<8x64xbf16>
    %42 = vector.shape_cast %39 : vector<8x64xbf16> to vector<1x8x64xbf16>
    tpu.vector_store %arg7[%c0_16, %c0_17, %c0_18], %42 {strides = array<i32>} : memref<1x8x64xbf16, #tpu.memory_space<vmem>>, vector<1x8x64xbf16>,
    return
  }
  func.func @transform_0(%arg0: i32, %arg1: i32) -> (i32, i32, i32) {
    %c0_i32 = arith.constant 0 : i32
    %c0_i32_0 = arith.constant 0 : i32
    return %arg0, %arg1, %c0_i32 : i32, i32, i32
  }
  func.func @transform_1(%arg0: i32, %arg1: i32) -> (i32, i32) {
    %c0_i32 = arith.constant 0 : i32
    %c0_i32_0 = arith.constant 0 : i32
    %c0_i32_1 = arith.constant 0 : i32
    return %c0_i32, %c0_i32_0 : i32, i32
  }
  func.func @transform_2(%arg0: i32, %arg1: i32) -> (i32, i32) {
    %c0_i32 = arith.constant 0 : i32
    %c0_i32_0 = arith.constant 0 : i32
    %c0_i32_1 = arith.constant 0 : i32
    return %c0_i32, %c0_i32_0 : i32, i32
  }
  func.func @transform_3(%arg0: i32, %arg1: i32) -> (i32, i32) {
    %c0_i32 = arith.constant 0 : i32
    %c0_i32_0 = arith.constant 0 : i32
    %c0_i32_1 = arith.constant 0 : i32
    return %c0_i32, %c0_i32_0 : i32, i32
  }
  func.func @transform_4(%arg0: i32, %arg1: i32) -> (i32, i32, i32) {
    %c0_i32 = arith.constant 0 : i32
    %c0_i32_0 = arith.constant 0 : i32
    return %arg0, %arg1, %c0_i32 : i32, i32, i32
  }
  func.func @transform_5(%arg0: i32, %arg1: i32) -> (i32, i32, i32) {
    %c0_i32 = arith.constant 0 : i32
    %c0_i32_0 = arith.constant 0 : i32
    return %arg0, %arg1, %c0_i32 : i32, i32, i32
  }
}

</mosaic_0001>

<llo_original>
// kernel: tpu_custom_call.1
$region0: #{tpu_custom_call.1}
  #allocation0 [shape = 'u32[]', space=smem, size = 0x4, offset = 0x4, fixed_abs, tag = 'smem constant byte address 0x4 - core index']
  #allocation1 [shape = 'u32[144,128]{1,0:T(1,128)}', space=vmem, size = 0x12000, scoped, tag = 'internal scratch']
  %s0 = inlined_call_operand.hbm [shape: f32[2,16,32], index: 0, kind: input, shape index: {}]
  %s1 = inlined_call_operand.vmem [shape: f32[1,32], index: 1, kind: input, shape index: {}]
  %s2 = inlined_call_operand.vmem [shape: f32[1,32], index: 2, kind: input, shape index: {}]
  %s3 = inlined_call_operand.hbm [shape: bf16[32,96], index: 3, kind: input, shape index: {}]
  %s4 = inlined_call_operand.hbm [shape: bf16[2,16,32], index: 4, kind: output, shape index: {0}]
  %s5 = inlined_call_operand.hbm [shape: bf16[2,16,64], index: 5, kind: output, shape index: {1}]
  %6 = xla_tuple %s4, %s5
  %s7 = sld [smem:[#allocation0]]
  $region65: #{tpu_custom_call.1} parent=0
    _
  %s9 = ssub.s32 1, %s7
  %s10 = scalar_select 0, %s9, %s7
  $region1: #{tpu_custom_call.1} parent=0
    #allocation2 [shape = 'u8[8192]{0}', space=vmem, size = 0x2000, scoped, tag = 'input window, operand 0']
    #allocation3 [shape = 's32[2]{0}', space=sflag, size = 0x8, scoped, tag = 'scoped memory for tpu_custom_call.1']
    #allocation4 [shape = 's32[2]{0}', space=sflag, size = 0x8, scoped, tag = 'scoped memory for tpu_custom_call.1']
    #allocation5 [shape = 'u8[8192]{0}', space=vmem, size = 0x2000, scoped, tag = 'input window, operand 3, single buffered']
    #allocation6 [shape = 's32[1]{0}', space=sflag, size = 0x4, scoped, tag = 'scoped memory for tpu_custom_call.1']
    #allocation7 [shape = 'u8[4096]{0}', space=vmem, size = 0x1000, scoped, tag = 'output window, operand 0']
    #allocation8 [shape = 'u8[4096]{0}', space=vmem, size = 0x1000, scoped, tag = 'output window, operand 1']
    #allocation9 [shape = 's32[2]{0}', space=sflag, size = 0x8, scoped, tag = 'scoped memory for tpu_custom_call.1']
    %11 = vsyncpa [#allocation3], 0
    %s12 = scalar_lea.sflag [#allocation3], 1
    %13 = vsyncpa %s12, 0
    %14 = vsyncpa [#allocation6], 0
    %15 = vsyncpa [#allocation4], 0
    %s16 = scalar_lea.sflag [#allocation4], 1
    %17 = vsyncpa %s16, 0
    %18 = vsyncpa [#allocation9], 0
    %s19 = scalar_lea.sflag [#allocation9], 1
    %20 = vsyncpa %s19, 0
    loop: start=0, step=1, limit=6
    $region2: #{tpu_custom_call.1} parent=1 // loop_pre_header
      _
    $region3: #{tpu_custom_call.1} parent=1 // loop_header
      %s22 = sphi 0, %s26
      %p23 = scmp.ge.s32.totalorder %s22, 6
      %s29 = sphi 0, %s41
      %s30 = sphi 0, %s37
      %s31 = sphi 0, %s29
      %s32 = sphi 0, %s30
      %s33 = sphi 0, %s31
      %s34 = sphi 0, %s32
      %s46 = sphi 0, %s48
      %s49 = sphi 0, %s46
      %s50 = sphi 0, %s49
      %s66 = sphi 0, %s50
      %s70 = sphi 0, %s70
      %s72 = sphi 0, %s70
      %s73 = sphi 0, %s72
      %s87 = sphi 0, %s73
      %s91 = sphi 0, %s91
      %s93 = sphi 0, %s91
      %s94 = sphi 0, %s93
      %s108 = sphi 0, %s94
      %s112 = sphi 0, %s112
      %s114 = sphi 0, %s112
      %s115 = sphi 0, %s114
      %s129 = sphi 0, %s115
      %s137 = sphi 0, %s139
      %s140 = sphi 0, %s137
      %s141 = sphi 0, %s140
      %s157 = sphi 0, %s141
      %s165 = sphi 0, %s167
      %s168 = sphi 0, %s165
      %s169 = sphi 0, %s168
      %s185 = sphi 0, %s169
    $region4: #{tpu_custom_call.1} parent=1 // loop_header_branch
      %25 = sbr.rel (%p23) target = $region8
    $region5: #{tpu_custom_call.1} parent=1 // loop_body
      %s27 = ssub.s32 %s22, 1
      %s28 = ssub.s32 %s22, 2
      %s35 = sadd.s32 1, %s30
      %p36 = scmp.ge.s32.totalorder %s35, 2
      %s37 = scalar_select %p36, 0, %s35
      %s38 = sadd.s32 1, %s29
      %s39 = scalar_select %p36, %s38, %s29
      %p40 = scmp.ge.s32.totalorder %s39, 2
      %s41 = scalar_select %p40, 0, %s39
      %s42 = ssub.s32 %s29, %s41
      %s43 = ssub.s32 %s30, %s37
      %s44 = sor.u32 %s42, %s43
      %p45 = scmp.eq.s32.totalorder %s44, 0
      %s47 = sadd.s32 %s46, 1
      %s48 = scalar_select %p45, %s46, %s47
      %p51 = pneg %p45
      %p52 = scmp.eq.s32.totalorder %s22, 3
      %p53 = por %p51, %p52
      %p54 = scmp.ne.s32.totalorder %s46, %s49
      %p55 = scmp.eq.s32.totalorder %s22, 0
      %p56 = por %p54, %p55
      %p57 = scmp.ne.s32.totalorder %s46, %s49
      %p58 = scmp.eq.s32.totalorder %s27, 3
      %p59 = por %p57, %p58
      %p60 = scmp.ne.s32.totalorder %s49, %s50
      %p61 = scmp.eq.s32.totalorder %s27, 0
      %p62 = por %p60, %p61
      %p63 = scmp.ne.s32.totalorder %s49, %s50
      %p64 = scmp.eq.s32.totalorder %s28, 3
      %p65 = por %p63, %p64
      %p67 = scmp.ne.s32.totalorder %s50, %s66
      %p68 = scmp.eq.s32.totalorder %s28, 0
      %p69 = por %p67, %p68
      %s71 = sadd.s32 %s70, 1
      %p74 = scmp.eq.s32.totalorder %s22, 3
      %p75 = scmp.ne.s32.totalorder %s70, %s72
      %p76 = scmp.eq.s32.totalorder %s22, 0
      %p77 = por %p75, %p76
      %p78 = scmp.ne.s32.totalorder %s70, %s72
      %p79 = scmp.eq.s32.totalorder %s27, 3
      %p80 = por %p78, %p79
      %p81 = scmp.ne.s32.totalorder %s72, %s73
      %p82 = scmp.eq.s32.totalorder %s27, 0
      %p83 = por %p81, %p82
      %p84 = scmp.ne.s32.totalorder %s72, %s73
      %p85 = scmp.eq.s32.totalorder %s28, 3
      %p86 = por %p84, %p85
      %p88 = scmp.ne.s32.totalorder %s73, %s87
      %p89 = scmp.eq.s32.totalorder %s28, 0
      %p90 = por %p88, %p89
      %s92 = sadd.s32 %s91, 1
      %p95 = scmp.eq.s32.totalorder %s22, 3
      %p96 = scmp.ne.s32.totalorder %s91, %s93
      %p97 = scmp.eq.s32.totalorder %s22, 0
      %p98 = por %p96, %p97
      %p99 = scmp.ne.s32.totalorder %s91, %s93
      %p100 = scmp.eq.s32.totalorder %s27, 3
      %p101 = por %p99, %p100
      %p102 = scmp.ne.s32.totalorder %s93, %s94
      %p103 = scmp.eq.s32.totalorder %s27, 0
      %p104 = por %p102, %p103
      %p105 = scmp.ne.s32.totalorder %s93, %s94
      %p106 = scmp.eq.s32.totalorder %s28, 3
      %p107 = por %p105, %p106
      %p109 = scmp.ne.s32.totalorder %s94, %s108
      %p110 = scmp.eq.s32.totalorder %s28, 0
      %p111 = por %p109, %p110
      %s113 = sadd.s32 %s112, 1
      %p116 = scmp.eq.s32.totalorder %s22, 3
      %p117 = scmp.ne.s32.totalorder %s112, %s114
      %p118 = scmp.eq.s32.totalorder %s22, 0
      %p119 = por %p117, %p118
      %p120 = scmp.ne.s32.totalorder %s112, %s114
      %p121 = scmp.eq.s32.totalorder %s27, 3
      %p122 = por %p120, %p121
      %p123 = scmp.ne.s32.totalorder %s114, %s115
      %p124 = scmp.eq.s32.totalorder %s27, 0
      %p125 = por %p123, %p124
      %p126 = scmp.ne.s32.totalorder %s114, %s115
      %p127 = scmp.eq.s32.totalorder %s28, 3
      %p128 = por %p126, %p127
      %p130 = scmp.ne.s32.totalorder %s115, %s129
      %p131 = scmp.eq.s32.totalorder %s28, 0
      %p132 = por %p130, %p131
      %s133 = ssub.s32 %s29, %s41
      %s134 = ssub.s32 %s30, %s37
      %s135 = sor.u32 %s133, %s134
      %p136 = scmp.eq.s32.totalorder %s135, 0
      %s138 = sadd.s32 %s137, 1
      %s139 = scalar_select %p136, %s137, %s138
      %p142 = pneg %p136
      %p143 = scmp.eq.s32.totalorder %s22, 3
      %p144 = por %p142, %p143
      %p145 = scmp.ne.s32.totalorder %s137, %s140
      %p146 = scmp.eq.s32.totalorder %s22, 0
      %p147 = por %p145, %p146
      %p148 = scmp.ne.s32.totalorder %s137, %s140
      %p149 = scmp.eq.s32.totalorder %s27, 3
      %p150 = por %p148, %p149
      %p151 = scmp.ne.s32.totalorder %s140, %s141
      %p152 = scmp.eq.s32.totalorder %s27, 0
      %p153 = por %p151, %p152
      %p154 = scmp.ne.s32.totalorder %s140, %s141
      %p155 = scmp.eq.s32.totalorder %s28, 3
      %p156 = por %p154, %p155
      %p158 = scmp.ne.s32.totalorder %s141, %s157
      %p159 = scmp.eq.s32.totalorder %s28, 0
      %p160 = por %p158, %p159
      %s161 = ssub.s32 %s29, %s41
      %s162 = ssub.s32 %s30, %s37
      %s163 = sor.u32 %s161, %s162
      %p164 = scmp.eq.s32.totalorder %s163, 0
      %s166 = sadd.s32 %s165, 1
      %s167 = scalar_select %p164, %s165, %s166
      %p170 = pneg %p164
      %p171 = scmp.eq.s32.totalorder %s22, 3
      %p172 = por %p170, %p171
      %p173 = scmp.ne.s32.totalorder %s165, %s168
      %p174 = scmp.eq.s32.totalorder %s22, 0
      %p175 = por %p173, %p174
      %p176 = scmp.ne.s32.totalorder %s165, %s168
      %p177 = scmp.eq.s32.totalorder %s27, 3
      %p178 = por %p176, %p177
      %p179 = scmp.ne.s32.totalorder %s168, %s169
      %p180 = scmp.eq.s32.totalorder %s27, 0
      %p181 = por %p179, %p180
      %p182 = scmp.ne.s32.totalorder %s168, %s169
      %p183 = scmp.eq.s32.totalorder %s28, 3
      %p184 = por %p182, %p183
      %p186 = scmp.ne.s32.totalorder %s169, %s185
      %p187 = scmp.eq.s32.totalorder %s28, 0
      %p188 = por %p186, %p187
      %p189 = scmp.le.s32.totalorder 1, %s22
      %p190 = scmp.lt.s32.totalorder %s22, 5
      %p191 = pnand %p189, %p190
      %p192 = pneg %p191
      // Predicated region
      $region9: #{tpu_custom_call.1} parent=5 // pred_check
        _
      $region10: #{tpu_custom_call.1} parent=5 // pred_check_branch
        %194 = sbr.rel (%p191) target = $region12
      $region11: #{tpu_custom_call.1} parent=5 // pred_region
        %s195 = ssub.s32 %s22, 1
        // Predicated region
        $region13: #{tpu_custom_call.1} parent=11 // pred_check
          %p196 = pneg %p83
        $region14: #{tpu_custom_call.1} parent=11 // pred_check_branch
          %198 = sbr.rel (%p196) target = $region16
        $region15: #{tpu_custom_call.1} parent=11 // pred_region
          _
        $region16: #{tpu_custom_call.1} parent=11 // pred_fallthru
          _
        // Predicated region
        $region17: #{tpu_custom_call.1} parent=11 // pred_check
          %p199 = pneg %p104
        $region18: #{tpu_custom_call.1} parent=11 // pred_check_branch
          %201 = sbr.rel (%p199) target = $region20
        $region19: #{tpu_custom_call.1} parent=11 // pred_region
          _
        $region20: #{tpu_custom_call.1} parent=11 // pred_fallthru
          _
        // Predicated region
        $region21: #{tpu_custom_call.1} parent=11 // pred_check
          %p202 = pneg %p125
        $region22: #{tpu_custom_call.1} parent=11 // pred_check_branch
          %204 = sbr.rel (%p202) target = $region24
        $region23: #{tpu_custom_call.1} parent=11 // pred_region
          %s206 = ssub.s32 256, 256
          %207 = vsyncadd [#allocation6], %s206
          %s208 = sshll.u32 [#allocation5], 4
          %s209 = int_to_ptr.vmem [resolvable:$true] %s208
          %214 = dma.hbm_to_vmem [thread:$0]  %s3, 256, %s209, [#allocation6], 64, 64, 4
        $region24: #{tpu_custom_call.1} parent=11 // pred_fallthru
          _
      $region12: #{tpu_custom_call.1} parent=5 // pred_fallthru
        _
      %p215 = scmp.lt.s32.totalorder %s22, 4
      // Predicated region
      $region25: #{tpu_custom_call.1} parent=5 // pred_check
        %p216 = pneg %p215
      $region26: #{tpu_custom_call.1} parent=5 // pred_check_branch
        %218 = sbr.rel (%p216) target = $region28
      $region27: #{tpu_custom_call.1} parent=5 // pred_region
        // Predicated region
        $region29: #{tpu_custom_call.1} parent=27 // pred_check
          %p219 = pneg %p56
        $region30: #{tpu_custom_call.1} parent=27 // pred_check_branch
          %221 = sbr.rel (%p219) target = $region32
        $region31: #{tpu_custom_call.1} parent=27 // pred_region
          %s222 = sand.u32 %s46, 1
          %s223 = scalar_lea.sflag [#allocation3], %s222
          %s224 = sand.u32 %s46, 1
          %s225 = smul.addr %s224, 8
          %s226 = scalar_lea.vmem [#allocation2], %s225
          %s228 = ssub.s32 128, 128
          %229 = vsyncadd %s223, %s228
          %s230 = smul.addr %s29, 2
          %s231 = sadd.s32 %s30, %s230
          %s232 = smul.addr %s231, 128
          %s233 = scalar_lea.hbm %s0, %s232
          %s235 = sshll.u32 %s226, 4
          %s236 = int_to_ptr.vmem [resolvable:$true] %s235
          %238 = dma.hbm_to_vmem [thread:$0]  %s233, 128, %s236, %s223
        $region32: #{tpu_custom_call.1} parent=27 // pred_fallthru
          _
      $region28: #{tpu_custom_call.1} parent=5 // pred_fallthru
        _
      %p239 = scmp.le.s32.totalorder 1, %s22
      %p240 = scmp.lt.s32.totalorder %s22, 5
      %p241 = pnand %p239, %p240
      %p242 = pneg %p241
      // Predicated region
      $region33: #{tpu_custom_call.1} parent=5 // pred_check
        _
      $region34: #{tpu_custom_call.1} parent=5 // pred_check_branch
        %244 = sbr.rel (%p241) target = $region36
      $region35: #{tpu_custom_call.1} parent=5 // pred_region
        %s245 = ssub.s32 %s22, 1
        %s246 = sand.u32 %s49, 1
        %s247 = scalar_lea.sflag [#allocation3], %s246
        %s248 = sand.u32 %s49, 1
        %s249 = smul.addr %s248, 8
        %s250 = scalar_lea.vmem [#allocation2], %s249
        // Predicated region
        $region37: #{tpu_custom_call.1} parent=35 // pred_check
          %p251 = pneg %p62
        $region38: #{tpu_custom_call.1} parent=35 // pred_check_branch
          %253 = sbr.rel (%p251) target = $region40
        $region39: #{tpu_custom_call.1} parent=35 // pred_region
          %254 = dma.done %s247, 128
        $region40: #{tpu_custom_call.1} parent=35 // pred_fallthru
          _
        // Predicated region
        $region41: #{tpu_custom_call.1} parent=35 // pred_check
          %p255 = pneg %p125
        $region42: #{tpu_custom_call.1} parent=35 // pred_check_branch
          %257 = sbr.rel (%p255) target = $region44
        $region43: #{tpu_custom_call.1} parent=35 // pred_region
          %258 = dma.done [#allocation6], 256
        $region44: #{tpu_custom_call.1} parent=35 // pred_fallthru
          _
        %s259 = sand.u32 %s49, 1
        %s260 = scalar_lea.sflag [#allocation3], %s259
        %s261 = sand.u32 %s49, 1
        %s262 = smul.addr %s261, 8
        %s263 = scalar_lea.vmem [#allocation2], %s262
        %p264 = pneg %p62
        %p265 = pneg %p59
        %p266 = pneg %p83
        %p267 = pneg %p80
        %p268 = pneg %p104
        %p269 = pneg %p101
        %p270 = pneg %p125
        %p271 = pneg %p122
        %p272 = pneg %p153
        %p273 = pneg %p150
        %s274 = sand.u32 %s140, 1
        %s275 = scalar_lea.sflag [#allocation4], %s274
        %s276 = sand.u32 %s140, 1
        %s277 = smul.addr %s276, 4
        %s278 = scalar_lea.vmem [#allocation7], %s277
        %p279 = pneg %p181
        %p280 = pneg %p178
        %s281 = sand.u32 %s168, 1
        %s282 = scalar_lea.sflag [#allocation9], %s281
        %s283 = sand.u32 %s168, 1
        %s284 = smul.addr %s283, 4
        %s285 = scalar_lea.vmem [#allocation8], %s284
        %v287 = vld [vmem:[%s250] sm:$0xff]
        %v288 = vld [vmem:[%s1] sm:$0x1]
        %v289 = vld [vmem:[%s2] sm:$0x1]
        %vm290 = vcmask 261120
        %v291 = vsel %vm290, %v287, 0.0
        %292 = vadd.xlane.f32.xlu0 %v291
        %v293 = vpop.xlane.xlu0 %292
        %v294 = vrcp.pop 32.0
        %v295 = vmul.f32 %v293, %v294
        %v296 = vsub.f32 %v287, %v295
        %v297 = vmul.f32 %v296, %v296
        %v298 = vsel %vm290, %v297, 0.0
        %299 = vadd.xlane.f32.xlu0 %v298
        %v300 = vpop.xlane.xlu0 %299
        %v301 = vmul.f32 %v300, %v294
        %v302 = vadd.f32 %v301, 1e-05
        %v303 = vrsqrt.pop %v302
        %v304 = vmul.f32 %v296, %v303
        %v306 = vlaneseq
        %v307 = vshrl.u32 %v306, 7
        %v308 = vsub.s32 0, %v307
        %v309 = vrot.slane %v288, %v308
        %v311 = vmul.f32 %v304, %v309
        %v313 = vlaneseq
        %v314 = vshrl.u32 %v313, 7
        %v315 = vsub.s32 0, %v314
        %v316 = vrot.slane %v289, %v315
        %v318 = vadd.f32 %v311, %v316
        %v319 = vpack.c.bf16 %v318, %v318
        %v320 = vld [vmem:[#allocation5] sm:$0xf]
        %v321 = vld [vmem:[#allocation5 + $0x4] sm:$0xf]
        %v322 = vld [vmem:[#allocation5 + $0x8] sm:$0xf]
        %v323 = vld [vmem:[#allocation5 + $0xc] sm:$0xf]
        %v328 = vunpack.c.l.b16 %v320
        %v329 = vunpack.c.l.b16 %v321
        %v330 = vunpack.c.l.b16 %v322
        %v331 = vunpack.c.l.b16 %v323
        %v332 = vpack.c.b16 %v329, %v328
        %v333 = vpack.c.b16 %v331, %v330
        %v337 = vsel %vm290, %v319, 0
        %339 = vmatprep.subr.bf16.mxu0 0
        %340 = vmatpush1.bf16.msra.mxu0 %v332
        %341 = vmatprep.subr.bf16.mxu0 0
        %342 = vmatpush1.bf16.msra.mxu0 %v333
        %343 = vmatprep.subr.bf16.mxu0 0
        %344 = vmatpush1.bf16.msra.mxu0 0
        %345 = vmatprep.subr.bf16.mxu0 0
        %346 = vmatpush1.bf16.msra.mxu0 0
        %347 = vmatprep.subr.bf16.mxu0 0
        %348 = vmatpush1.bf16.msra.mxu0 0
        %349 = vmatprep.subr.bf16.mxu0 0
        %350 = vmatpush1.bf16.msra.mxu0 0
        %351 = vmatprep.subr.bf16.mxu0 0
        %352 = vmatpush1.bf16.msra.mxu0 0
        %353 = vmatprep.subr.bf16.mxu0 0
        %354 = vmatpush1.bf16.msra.mxu0 0
        %355 = vmatprep.subr.bf16.mxu0 0
        %356 = vmatpush1.bf16.msra.mxu0 0
        %357 = vmatprep.subr.bf16.mxu0 0
        %358 = vmatpush1.bf16.msra.mxu0 0
        %359 = vmatprep.subr.bf16.mxu0 0
        %360 = vmatpush1.bf16.msra.mxu0 0
        %361 = vmatprep.subr.bf16.mxu0 0
        %362 = vmatpush1.bf16.msra.mxu0 0
        %363 = vmatprep.subr.bf16.mxu0 0
        %364 = vmatpush1.bf16.msra.mxu0 0
        %365 = vmatprep.subr.bf16.mxu0 0
        %366 = vmatpush1.bf16.msra.mxu0 0
        %367 = vmatprep.subr.bf16.mxu0 0
        %368 = vmatpush1.bf16.msra.mxu0 0
        %369 = vmatprep.subr.bf16.mxu0 0
        %370 = vmatpush1.bf16.msra.mxu0 0
        %371 = vmatprep.mubr.bf16.mxu0 0
        %372 = vmatmul.mubr.bf16.gmra.mrb[0].mxu0 %v337
        %v373 = vpop.f32.mrb[0].mxu0
        %v374 = vadd.f32 0.0, %v373
        %v375 = vpop.f32.mrb[0].mxu0
        %v376 = vpop.f32.mrb[0].mxu0
        %v377 = vpop.f32.mrb[0].mxu0
        %378 = vdwg.mxu0
        %v379 = vpack.c.bf16 %v374, %v374
        %vm380 = vcmask 257024
        %381 = vst.msk [vmem:[%s278] sm:$0xf] %vm380, %v379
        %v383 = vunpack.c.l.b16 %v379
        %v384 = vpack.c.b16 %v383, %v383
        %385 = vrot.lane.b32.xlu0 %v384, 96
        %v386 = vpop.permute.xlu0 %385
        %vm388 = vcmask 519168
        %389 = vst.msk [vmem:[%s285] sm:$0xf] %vm388, %v386
        %s390 = sand.u32 %s140, 1
        %s391 = scalar_lea.sflag [#allocation4], %s390
        %s392 = sand.u32 %s140, 1
        %s393 = smul.addr %s392, 4
        %s394 = scalar_lea.vmem [#allocation7], %s393
        %s395 = sand.u32 %s168, 1
        %s396 = scalar_lea.sflag [#allocation9], %s395
        %s397 = sand.u32 %s168, 1
        %s398 = smul.addr %s397, 4
        %s399 = scalar_lea.vmem [#allocation8], %s398
        // Predicated region
        $region45: #{tpu_custom_call.1} parent=35 // pred_check
          %p400 = pneg %p150
        $region46: #{tpu_custom_call.1} parent=35 // pred_check_branch
          %402 = sbr.rel (%p400) target = $region48
        $region47: #{tpu_custom_call.1} parent=35 // pred_region
          %s404 = ssub.s32 64, 64
          %405 = vsyncadd %s391, %s404
          %s406 = smul.addr %s31, 2
          %s407 = sadd.s32 %s32, %s406
          %s408 = smul.addr %s407, 64
          %s409 = scalar_lea.hbm %s4, %s408
          %s411 = sshll.u32 %s394, 4
          %s412 = int_to_ptr.vmem [resolvable:$true] %s411
          %414 = dma.vmem_to_hbm [thread:$0]  %s412, 64, %s409, %s391
        $region48: #{tpu_custom_call.1} parent=35 // pred_fallthru
          _
        // Predicated region
        $region49: #{tpu_custom_call.1} parent=35 // pred_check
          %p415 = pneg %p178
        $region50: #{tpu_custom_call.1} parent=35 // pred_check_branch
          %417 = sbr.rel (%p415) target = $region52
        $region51: #{tpu_custom_call.1} parent=35 // pred_region
          %s419 = ssub.s32 64, 64
          %420 = vsyncadd %s396, %s419
          %s421 = smul.addr %s31, 2
          %s422 = sadd.s32 %s32, %s421
          %s423 = smul.addr %s422, 64
          %s424 = scalar_lea.hbm %s5, %s423
          %s426 = sshll.u32 %s399, 4
          %s427 = int_to_ptr.vmem [resolvable:$true] %s426
          %429 = dma.vmem_to_hbm [thread:$0]  %s427, 64, %s424, %s396
        $region52: #{tpu_custom_call.1} parent=35 // pred_fallthru
          _
      $region36: #{tpu_custom_call.1} parent=5 // pred_fallthru
        _
      %p430 = scmp.le.s32.totalorder 2, %s22
      // Predicated region
      $region53: #{tpu_custom_call.1} parent=5 // pred_check
        %p431 = pneg %p430
      $region54: #{tpu_custom_call.1} parent=5 // pred_check_branch
        %433 = sbr.rel (%p431) target = $region56
      $region55: #{tpu_custom_call.1} parent=5 // pred_region
        %s434 = ssub.s32 %s22, 2
        // Predicated region
        $region57: #{tpu_custom_call.1} parent=55 // pred_check
          %p435 = pneg %p156
        $region58: #{tpu_custom_call.1} parent=55 // pred_check_branch
          %437 = sbr.rel (%p435) target = $region60
        $region59: #{tpu_custom_call.1} parent=55 // pred_region
          %s438 = sand.u32 %s141, 1
          %s439 = scalar_lea.sflag [#allocation4], %s438
          %s440 = sand.u32 %s141, 1
          %s441 = smul.addr %s440, 4
          %s442 = scalar_lea.vmem [#allocation7], %s441
          %443 = dma.done %s439, 64
        $region60: #{tpu_custom_call.1} parent=55 // pred_fallthru
          _
        // Predicated region
        $region61: #{tpu_custom_call.1} parent=55 // pred_check
          %p444 = pneg %p184
        $region62: #{tpu_custom_call.1} parent=55 // pred_check_branch
          %446 = sbr.rel (%p444) target = $region64
        $region63: #{tpu_custom_call.1} parent=55 // pred_region
          %s447 = sand.u32 %s169, 1
          %s448 = scalar_lea.sflag [#allocation9], %s447
          %s449 = sand.u32 %s169, 1
          %s450 = smul.addr %s449, 4
          %s451 = scalar_lea.vmem [#allocation8], %s450
          %452 = dma.done %s448, 64
        $region64: #{tpu_custom_call.1} parent=55 // pred_fallthru
          _
      $region56: #{tpu_custom_call.1} parent=5 // pred_fallthru
        _
    $region6: #{tpu_custom_call.1} parent=1 // loop_footer
      %s26 = sadd.s32 1, %s22
    $region7: #{tpu_custom_call.1} parent=1 // loop_footer_branch
      %21 = sbr.rel target = $region3
    $region8: #{tpu_custom_call.1} parent=1 // loop_exit
      _
    %453 = vsyncpa [#allocation3], 1
    %s454 = scalar_lea.sflag [#allocation3], 1
    %455 = vsyncpa %s454, 1
    %456 = vsyncpa [#allocation6], 1
    %457 = vsyncpa [#allocation4], 1
    %s458 = scalar_lea.sflag [#allocation4], 1
    %459 = vsyncpa %s458, 1
    %460 = vsyncpa [#allocation9], 1
    %s461 = scalar_lea.sflag [#allocation9], 1
    %462 = vsyncpa %s461, 1

</llo_original>
